<compile_context>
chip_gen: v7x
topology: tpu7x:2x2x1
jax: 0.10.0
libtpu: 0.0.40
codegen_flags: <defaults>
</compile_context>

<pallas_src>
import functools

import jax
import jax.numpy as jnp
from jax.experimental import pallas as pl
from jax.experimental.pallas import tpu as pltpu

_INV_SQRT2 = 0.7071067811865476


def _round_up(x, m):
    return ((x + m - 1) // m) * m


def _pick_chunk(n, max_chunk=512):
    """Largest 128-multiple divisor of n that is <= max_chunk (else n itself)."""
    if n <= max_chunk:
        return n
    for c in range(max_chunk, 127, -128):
        if n % c == 0:
            return c
    return n  # fallback: no chunking


def _mlp_kernel(x_ref, w1t_ref, b1_ref, w2t_ref, b2_ref, o_ref, acc_ref,
                *, n_chunk, num_chunks):
    """One token tile: o = gelu(x @ W1t + b1) @ W2t + b2.

    SFG gates are already folded into W1t/b1/W2t/b2 by the wrapper.  The
    mlp_dim axis is processed in n_chunk-wide slices of the VMEM-resident
    weights so the live f32 intermediate stays bounded (no tm x mlp_dim spill).
    """
    x = x_ref[...]

    def fc1_gelu(w1_blk, b1_blk):
        h = jnp.dot(x, w1_blk, preferred_element_type=jnp.float32)
        h = h + b1_blk
        # Exact erf GELU (matches torch.nn.functional.gelu default numerics).
        # (On v5e the erf polynomial can bind the VALU slot; the tanh-approx
        #  GELU is a drop-in EUP alternative if numerics allow.)
        return 0.5 * h * (1.0 + jax.lax.erf(h * jnp.float32(_INV_SQRT2)))

    if num_chunks == 1:
        # Small mlp_dim: single fused pass, no accumulator needed.
        h = fc1_gelu(w1t_ref[...], b1_ref[...])
        y = jnp.dot(h.astype(w2t_ref.dtype), w2t_ref[...],
                    preferred_element_type=jnp.float32)
        o_ref[...] = (y + b2_ref[...]).astype(o_ref.dtype)
    else:
        acc_ref[...] = jnp.zeros_like(acc_ref)

        def body(c, carry):
            start = pl.multiple_of(c * n_chunk, n_chunk)
            h = fc1_gelu(w1t_ref[:, pl.ds(start, n_chunk)],
                         b1_ref[:, pl.ds(start, n_chunk)])
            w2_blk = w2t_ref[pl.ds(start, n_chunk), :]
            acc_ref[...] += jnp.dot(h.astype(w2_blk.dtype), w2_blk,
                                    preferred_element_type=jnp.float32)
            return carry

        # Short, fixed trip count -> unroll for LLO scheduler visibility.
        jax.lax.fori_loop(0, num_chunks, body, 0, unroll=True)
        o_ref[...] = (acc_ref[...] + b2_ref[...]).astype(o_ref.dtype)
    # TODO(synk): training-mode stochastic dropout would need pltpu.prng_* here.


@functools.partial(jax.jit, static_argnames=("tm",))
def mlp_forward(x, params, *, tm=512):
    """x: (B, S, hidden). Returns (B, S, hidden).  Eval-mode forward."""
    B, S, H = x.shape
    M = B * S
    (w1, b1, l1, r1, s1, w2, b2, l2, r2, s2) = params
    mlp_dim = w1.shape[0]
    compute_dtype = x.dtype  # feed bf16 activations for the bf16 MXU path.

    # One-time RKR weight composition + SFG-gate fold + pre-transposition to
    # (h_in, h_out) so both in-kernel matmuls are canonical [M,K]x[K,N].
    w1_eff = w1 + l1 @ r1                                   # (mlp_dim, H)
    w2_eff = w2 + l2 @ r2                                   # (H, mlp_dim)
    w1t = (w1_eff * s1[:, None]).T.astype(compute_dtype)    # (H, mlp_dim)
    b1r = (b1 * s1).astype(jnp.float32).reshape(1, mlp_dim)
    w2t = (w2_eff * s2[:, None]).T.astype(compute_dtype)    # (mlp_dim, H)
    b2r = (b2 * s2).astype(jnp.float32).reshape(1, H)

    # Token tiling: tm tokens per grid step; ragged last block is masked by
    # Pallas (no pad / slice HBM round-trip).
    tm_eff = min(tm, _round_up(M, 8))
    grid = (pl.cdiv(M, tm_eff),)
    x2d = x.reshape(M, H)

    # In-kernel chunking of the mlp_dim axis (bounds the f32 intermediate).
    n_chunk = _pick_chunk(mlp_dim)
    num_chunks = mlp_dim // n_chunk

    kernel = functools.partial(_mlp_kernel, n_chunk=n_chunk,
                               num_chunks=num_chunks)

    out2d = pl.pallas_call(
        kernel,
        out_shape=jax.ShapeDtypeStruct((M, H), x.dtype),
        grid=grid,
        in_specs=[
            # Activation tile: streamed / double-buffered over the grid.
            pl.BlockSpec((tm_eff, H), lambda i: (i, 0)),
            # Composed weights / biases: constant index_map -> VMEM-resident,
            # single-buffered (their block never changes).
            pl.BlockSpec((H, mlp_dim), lambda i: (0, 0),
                         pipeline_mode=pl.Buffered(1)),
            pl.BlockSpec((1, mlp_dim), lambda i: (0, 0),
                         pipeline_mode=pl.Buffered(1)),
            pl.BlockSpec((mlp_dim, H), lambda i: (0, 0),
                         pipeline_mode=pl.Buffered(1)),
            pl.BlockSpec((1, H), lambda i: (0, 0),
                         pipeline_mode=pl.Buffered(1)),
        ],
        out_specs=pl.BlockSpec((tm_eff, H), lambda i: (i, 0)),
        scratch_shapes=[pltpu.VMEM((tm_eff, H), jnp.float32)],
        compiler_params=pltpu.CompilerParams(
            # Token axis is independent -> shard across v7x's 2 TensorCores
            # (no-op on v5e/v6e).
            dimension_semantics=("parallel",),
            # Resident weights (single-buffered) + streamed tiles + scratch;
            # leaves headroom under v7x's 64 MiB physical VMEM.
            vmem_limit_bytes=48 * 1024 * 1024,
        ),
    )(x2d, w1t, b1r, w2t, b2r)

    return out2d.reshape(B, S, H)


def init_params(key, hidden_size, mlp_dim, K, rkr_scale):
    """Deterministic parameter init mirroring the module's __init__ shapes."""
    ks = jax.random.split(key, 10)

    def xavier(k, shape):
        fan_out, fan_in = shape
        limit = jnp.sqrt(6.0 / (fan_in + fan_out))
        return jax.random.uniform(k, shape, jnp.float32, -limit, limit)

    def kaiming(k, shape):
        fan_in = shape[1]
        limit = jnp.sqrt(6.0 / fan_in)
        return jax.random.uniform(k, shape, jnp.float32, -limit, limit)

    # fc1: RG_FC(hidden_size -> mlp_dim)
    w1 = xavier(ks[0], (mlp_dim, hidden_size))                     # self.weight
    b1 = 1e-6 * jax.random.normal(ks[1], (mlp_dim,), jnp.float32)  # self.bias
    l1 = kaiming(ks[2], (mlp_dim, K)) * rkr_scale                  # unc_filt_LM
    r1 = kaiming(ks[3], (K, hidden_size)) * rkr_scale              # unc_filt_RM
    # SFG_F initializes to ones in the module; perturb here so the SFG fold
    # into the weights is actually exercised by the correctness check.
    s1 = 1.0 + 0.1 * jax.random.normal(ks[8], (mlp_dim,), jnp.float32)

    # fc2: RG_FC(mlp_dim -> hidden_size)
    w2 = xavier(ks[4], (hidden_size, mlp_dim))
    b2 = 1e-6 * jax.random.normal(ks[5], (hidden_size,), jnp.float32)
    l2 = kaiming(ks[6], (hidden_size, K)) * rkr_scale
    r2 = kaiming(ks[7], (K, mlp_dim)) * rkr_scale
    s2 = 1.0 + 0.1 * jax.random.normal(ks[9], (hidden_size,), jnp.float32)

    return (w1, b1, l1, r1, s1, w2, b2, l2, r2, s2)


def mlp_reference(x, params):
    """Pure-JAX reference (un-fused, un-folded) for a sanity check."""
    (w1, b1, l1, r1, s1, w2, b2, l2, r2, s2) = params
    w1_eff = l1 @ r1 + w1
    w2_eff = l2 @ r2 + w2
    h = x @ w1_eff.T + b1
    h = h * s1
    h = 0.5 * h * (1.0 + jax.lax.erf(h / jnp.sqrt(2.0)))
    y = h @ w2_eff.T + b2
    y = y * s2
    return y


if __name__ == "__main__":
    key = jax.random.PRNGKey(0)
    k_x, k_p, k_x2, k_p2 = jax.random.split(key, 4)
    rkr_scale = 0.1

    # --- Test 1: tiny config (single-chunk kernel path) ---------------------
    B, S, hidden_size, mlp_dim, K = 2, 8, 32, 64, 8
    x = jax.random.normal(k_x, (B, S, hidden_size), jnp.float32)
    params = init_params(k_p, hidden_size, mlp_dim, K, rkr_scale)

    out = jax.block_until_ready(mlp_forward(x, params))
    ref = mlp_reference(x, params)
    assert out.shape == (B, S, hidden_size)
    assert jnp.allclose(out, ref, atol=1e-4, rtol=1e-4), "mismatch (test 1)"

    # --- Test 2: larger mlp_dim so the chunked-accumulator path compiles ----
    B2, S2, hidden2, mlp2, K2 = 1, 128, 128, 1024, 8
    x2 = jax.random.normal(k_x2, (B2, S2, hidden2), jnp.float32)
    params2 = init_params(k_p2, hidden2, mlp2, K2, rkr_scale)

    out2 = jax.block_until_ready(mlp_forward(x2, params2))
    ref2 = mlp_reference(x2, params2)
    assert out2.shape == (B2, S2, hidden2)
    assert jnp.allclose(out2, ref2, atol=1e-3, rtol=1e-3), "mismatch (test 2)"

    print("KERNEL_OK")
</pallas_src>

<mosaic_0001>
module attributes {stable_mosaic.version = 11 : i64} {
  func.func @_mlp_kernel(%arg0: i32, %arg1: memref<16x32xf32, #tpu.memory_space<vmem>>, %arg2: memref<32x64xf32, #tpu.memory_space<vmem>>, %arg3: memref<1x64xf32, #tpu.memory_space<vmem>>, %arg4: memref<64x32xf32, #tpu.memory_space<vmem>>, %arg5: memref<1x32xf32, #tpu.memory_space<vmem>>, %arg6: memref<16x32xf32, #tpu.memory_space<vmem>>, %arg7: memref<16x32xf32, #tpu.memory_space<vmem>>) attributes {dimension_semantics = [#tpu.dimension_semantics<parallel>], iteration_bounds = array<i64: 1>, scalar_prefetch = 0 : i64, scratch_operands = 1 : i64, tpu.core_type = #tpu.core_type<tc>, window_params = [{transform_indices = @transform_0, window_bounds = array<i64: 16, 32>}, {pipeline_mode = #tpu.pipeline_mode<synchronous>, transform_indices = @transform_1, window_bounds = array<i64: 32, 64>}, {pipeline_mode = #tpu.pipeline_mode<synchronous>, transform_indices = @transform_2, window_bounds = array<i64: 1, 64>}, {pipeline_mode = #tpu.pipeline_mode<synchronous>, transform_indices = @transform_3, window_bounds = array<i64: 64, 32>}, {pipeline_mode = #tpu.pipeline_mode<synchronous>, transform_indices = @transform_4, window_bounds = array<i64: 1, 32>}, {transform_indices = @transform_5, window_bounds = array<i64: 16, 32>}]} {
    %c0 = arith.constant 0 : index
    %c0_0 = arith.constant 0 : index
    %0 = vector.load %arg1[%c0, %c0_0] : memref<16x32xf32, #tpu.memory_space<vmem>>, vector<16x32xf32>
    %c0_1 = arith.constant 0 : index
    %c0_2 = arith.constant 0 : index
    %1 = vector.load %arg2[%c0_1, %c0_2] : memref<32x64xf32, #tpu.memory_space<vmem>>, vector<32x64xf32>
    %c0_3 = arith.constant 0 : index
    %c0_4 = arith.constant 0 : index
    %2 = vector.load %arg3[%c0_3, %c0_4] : memref<1x64xf32, #tpu.memory_space<vmem>>, vector<1x64xf32>
    %cst = arith.constant dense<0.000000e+00> : vector<16x64xf32>
    %3 = tpu.matmul %0, %1, %cst {dimension_numbers = #tpu.dot_dimension_numbers<[1], [0], [0], [1], [0, 0, 1, 1], [], []>} : vector<16x32xf32>, vector<32x64xf32>, vector<16x64xf32> -> vector<16x64xf32>
    %4 = vector.broadcast %2 : vector<1x64xf32> to vector<16x64xf32>
    %5 = arith.addf %3, %4 : vector<16x64xf32>
    %cst_5 = arith.constant 5.000000e-01 : f32
    %6 = vector.broadcast %cst_5 : f32 to vector<16x64xf32>
    %7 = arith.mulf %6, %5 : vector<16x64xf32>
    %cst_6 = arith.constant 0.707106769 : f32
    %8 = vector.broadcast %cst_6 : f32 to vector<16x64xf32>
    %9 = arith.mulf %5, %8 : vector<16x64xf32>
    %10 = math.erf %9 : vector<16x64xf32>
    %cst_7 = arith.constant 1.000000e+00 : f32
    %11 = vector.broadcast %cst_7 : f32 to vector<16x64xf32>
    %12 = arith.addf %11, %10 : vector<16x64xf32>
    %13 = arith.mulf %7, %12 : vector<16x64xf32>
    %c0_8 = arith.constant 0 : index
    %c0_9 = arith.constant 0 : index
    %14 = vector.load %arg4[%c0_8, %c0_9] : memref<64x32xf32, #tpu.memory_space<vmem>>, vector<64x32xf32>
    %cst_10 = arith.constant dense<0.000000e+00> : vector<16x32xf32>
    %15 = tpu.matmul %13, %14, %cst_10 {dimension_numbers = #tpu.dot_dimension_numbers<[1], [0], [0], [1], [0, 0, 1, 1], [], []>} : vector<16x64xf32>, vector<64x32xf32>, vector<16x32xf32> -> vector<16x32xf32>
    %c0_11 = arith.constant 0 : index
    %c0_12 = arith.constant 0 : index
    %16 = vector.load %arg5[%c0_11, %c0_12] : memref<1x32xf32, #tpu.memory_space<vmem>>, vector<1x32xf32>
    %17 = vector.broadcast %16 : vector<1x32xf32> to vector<16x32xf32>
    %18 = arith.addf %15, %17 : vector<16x32xf32>
    %c0_13 = arith.constant 0 : index
    %c0_14 = arith.constant 0 : index
    %19 = vector.load %arg6[%c0_13, %c0_14] : memref<16x32xf32, #tpu.memory_space<vmem>>, vector<16x32xf32>
    tpu.vector_store %arg6[%c0_13, %c0_14], %18 {strides = array<i32>} : memref<16x32xf32, #tpu.memory_space<vmem>>, vector<16x32xf32>,
    return
  }
  func.func @transform_0(%arg0: i32) -> (i32, i32) {
    %c0_i32 = arith.constant 0 : i32
    %c0_i32_0 = arith.constant 0 : i32
    return %arg0, %c0_i32 : i32, i32
  }
  func.func @transform_1(%arg0: i32) -> (i32, i32) {
    %c0_i32 = arith.constant 0 : i32
    %c0_i32_0 = arith.constant 0 : i32
    %c0_i32_1 = arith.constant 0 : i32
    return %c0_i32, %c0_i32_0 : i32, i32
  }
  func.func @transform_2(%arg0: i32) -> (i32, i32) {
    %c0_i32 = arith.constant 0 : i32
    %c0_i32_0 = arith.constant 0 : i32
    %c0_i32_1 = arith.constant 0 : i32
    return %c0_i32, %c0_i32_0 : i32, i32
  }
  func.func @transform_3(%arg0: i32) -> (i32, i32) {
    %c0_i32 = arith.constant 0 : i32
    %c0_i32_0 = arith.constant 0 : i32
    %c0_i32_1 = arith.constant 0 : i32
    return %c0_i32, %c0_i32_0 : i32, i32
  }
  func.func @transform_4(%arg0: i32) -> (i32, i32) {
    %c0_i32 = arith.constant 0 : i32
    %c0_i32_0 = arith.constant 0 : i32
    %c0_i32_1 = arith.constant 0 : i32
    return %c0_i32, %c0_i32_0 : i32, i32
  }
  func.func @transform_5(%arg0: i32) -> (i32, i32) {
    %c0_i32 = arith.constant 0 : i32
    %c0_i32_0 = arith.constant 0 : i32
    return %arg0, %c0_i32 : i32, i32
  }
}

</mosaic_0001>

<llo_original>
// kernel: mlp_forward.1
$region0: #{mlp_forward.1}
  #allocation0 [shape = 'u32[]', space=smem, size = 0x4, offset = 0x4, fixed_abs, tag = 'smem constant byte address 0x4 - core index']
  #allocation1 [shape = 'u32[144,128]{1,0:T(1,128)}', space=vmem, size = 0x12000, scoped, tag = 'internal scratch']
  #allocation2 [shape = 'f32[16,32]{1,0:T(8,128)}', space=vmem, size = 0x2000, scoped, tag = 'scratch operand']
  %s0 = inlined_call_operand.vmem [shape: f32[16,32], index: 0, kind: input, shape index: {}]
  %s1 = inlined_call_operand.vmem [shape: f32[32,64], index: 1, kind: input, shape index: {}]
  %s2 = inlined_call_operand.vmem [shape: f32[1,64], index: 2, kind: input, shape index: {}]
  %s3 = inlined_call_operand.vmem [shape: f32[64,32], index: 3, kind: input, shape index: {}]
  %s4 = inlined_call_operand.vmem [shape: f32[1,32], index: 4, kind: input, shape index: {}]
  %s5 = inlined_call_operand.hbm [shape: f32[16,32], index: 5, kind: output, shape index: {}]
  %s6 = sld [smem:[#allocation0]]
  $region30: #{mlp_forward.1} parent=0
    _
  %s8 = ssub.s32 1, %s6
  %s9 = scalar_select 0, %s8, %s6
  $region1: #{mlp_forward.1} parent=0
    #allocation3 [shape = 'u8[8192]{0}', space=vmem, size = 0x2000, scoped, tag = 'output window, operand 0, single buffered']
    #allocation4 [shape = 's32[1]{0}', space=sflag, size = 0x4, scoped, tag = 'scoped memory for mlp_forward.1']
    %10 = vsyncpa [#allocation4], 0
    // Predicated region
    $region2: #{mlp_forward.1} parent=1 // pred_check
      _
    $region3: #{mlp_forward.1} parent=1 // pred_check_branch
      %12 = sbr.rel (0) target = $region5
    $region4: #{mlp_forward.1} parent=1 // pred_region
      _
    $region5: #{mlp_forward.1} parent=1 // pred_fallthru
      _
    // Predicated region
    $region6: #{mlp_forward.1} parent=1 // pred_check
      _
    $region7: #{mlp_forward.1} parent=1 // pred_check_branch
      %14 = sbr.rel (0) target = $region9
    $region8: #{mlp_forward.1} parent=1 // pred_region
      _
    $region9: #{mlp_forward.1} parent=1 // pred_fallthru
      _
    // Predicated region
    $region10: #{mlp_forward.1} parent=1 // pred_check
      _
    $region11: #{mlp_forward.1} parent=1 // pred_check_branch
      %16 = sbr.rel (0) target = $region13
    $region12: #{mlp_forward.1} parent=1 // pred_region
      _
    $region13: #{mlp_forward.1} parent=1 // pred_fallthru
      _
    // Predicated region
    $region14: #{mlp_forward.1} parent=1 // pred_check
      _
    $region15: #{mlp_forward.1} parent=1 // pred_check_branch
      %18 = sbr.rel (0) target = $region17
    $region16: #{mlp_forward.1} parent=1 // pred_region
      _
    $region17: #{mlp_forward.1} parent=1 // pred_fallthru
      _
    // Predicated region
    $region18: #{mlp_forward.1} parent=1 // pred_check
      _
    $region19: #{mlp_forward.1} parent=1 // pred_check_branch
      %20 = sbr.rel (0) target = $region21
    $region20: #{mlp_forward.1} parent=1 // pred_region
      _
    $region21: #{mlp_forward.1} parent=1 // pred_fallthru
      _
    %v21 = vld [vmem:[%s0] sm:$0xff]
    %v22 = vld [vmem:[%s0 + $0x8] sm:$0xff]
    %v23 = vld [vmem:[%s1] sm:$0xff]
    %v24 = vld [vmem:[%s1 + $0x8] sm:$0xff]
    %v25 = vld [vmem:[%s1 + $0x10] sm:$0xff]
    %v26 = vld [vmem:[%s1 + $0x18] sm:$0xff]
    %v27 = vld [vmem:[%s2] sm:$0x1]
    %v29 = vlaneseq
    %v30 = vshrl.u32 %v29, 7
    %v31 = vsub.s32 0, %v30
    %v32 = vrot.slane %v27, %v31
    %vm34 = vcmask 261120
    %v36 = vsel %vm34, %v21, 0
    %v39 = vsel %vm34, %v22, 0
    %41 = vmatprep.subr.mxu0 0.0
    %42 = vmatpush1.msra.mxu0 %v23
    %43 = vmatprep.subr.mxu0 0.0
    %44 = vmatpush1.msra.mxu0 %v24
    %45 = vmatprep.subr.mxu0 0.0
    %46 = vmatpush1.msra.mxu0 %v25
    %47 = vmatprep.subr.mxu0 0.0
    %48 = vmatpush1.msra.mxu0 %v26
    %49 = vmatprep.subr.mxu0 0.0
    %50 = vmatpush1.msra.mxu0 0.0
    %51 = vmatprep.subr.mxu0 0.0
    %52 = vmatpush1.msra.mxu0 0.0
    %53 = vmatprep.subr.mxu0 0.0
    %54 = vmatpush1.msra.mxu0 0.0
    %55 = vmatprep.subr.mxu0 0.0
    %56 = vmatpush1.msra.mxu0 0.0
    %57 = vmatprep.subr.mxu0 0.0
    %58 = vmatpush1.msra.mxu0 0.0
    %59 = vmatprep.subr.mxu0 0.0
    %60 = vmatpush1.msra.mxu0 0.0
    %61 = vmatprep.subr.mxu0 0.0
    %62 = vmatpush1.msra.mxu0 0.0
    %63 = vmatprep.subr.mxu0 0.0
    %64 = vmatpush1.msra.mxu0 0.0
    %65 = vmatprep.subr.mxu0 0.0
    %66 = vmatpush1.msra.mxu0 0.0
    %67 = vmatprep.subr.mxu0 0.0
    %68 = vmatpush1.msra.mxu0 0.0
    %69 = vmatprep.subr.mxu0 0.0
    %70 = vmatpush1.msra.mxu0 0.0
    %71 = vmatprep.subr.mxu0 0.0
    %72 = vmatpush1.msra.mxu0 0.0
    %73 = vmatprep.subr.mxu0 0.0
    %74 = vmatpush1.msra.mxu0 0.0
    %75 = vmatprep.subr.mxu0 0.0
    %76 = vmatpush1.msra.mxu0 0.0
    %77 = vmatprep.subr.mxu0 0.0
    %78 = vmatpush1.msra.mxu0 0.0
    %79 = vmatprep.subr.mxu0 0.0
    %80 = vmatpush1.msra.mxu0 0.0
    %81 = vmatprep.subr.mxu0 0.0
    %82 = vmatpush1.msra.mxu0 0.0
    %83 = vmatprep.subr.mxu0 0.0
    %84 = vmatpush1.msra.mxu0 0.0
    %85 = vmatprep.subr.mxu0 0.0
    %86 = vmatpush1.msra.mxu0 0.0
    %87 = vmatprep.subr.mxu0 0.0
    %88 = vmatpush1.msra.mxu0 0.0
    %89 = vmatprep.subr.mxu0 0.0
    %90 = vmatpush1.msra.mxu0 0.0
    %91 = vmatprep.subr.mxu0 0.0
    %92 = vmatpush1.msra.mxu0 0.0
    %93 = vmatprep.subr.mxu0 0.0
    %94 = vmatpush1.msra.mxu0 0.0
    %95 = vmatprep.subr.mxu0 0.0
    %96 = vmatpush1.msra.mxu0 0.0
    %97 = vmatprep.subr.mxu0 0.0
    %98 = vmatpush1.msra.mxu0 0.0
    %99 = vmatprep.subr.mxu0 0.0
    %100 = vmatpush1.msra.mxu0 0.0
    %101 = vmatprep.subr.mxu0 0.0
    %102 = vmatpush1.msra.mxu0 0.0
    %103 = vmatprep.subr.mxu0 0.0
    %104 = vmatpush1.msra.mxu0 0.0
    %105 = vmatprep.mubr.f32.mxu0 0.0
    %106 = vmatmul.mubr.f32.gmra.mrb[0].mxu0 %v36
    %v107 = vpop.f32.mrb[0].mxu0
    %v108 = vadd.f32 %v32, %v107
    %v109 = vpop.f32.mrb[0].mxu0
    %110 = vmatprep.mubr.f32.mxu0 0.0
    %111 = vmatmul.mubr.f32.gmra.mrb[0].mxu0 %v39
    %v112 = vpop.f32.mrb[0].mxu0
    %v113 = vadd.f32 %v32, %v112
    %v114 = vpop.f32.mrb[0].mxu0
    %115 = vdwg.mxu0
    %v116 = vmul.f32 %v108, 0.5
    %v117 = vmul.f32 %v113, 0.5
    %v118 = vmul.f32 %v108, 0.70710677
    %v119 = vmul.f32 %v113, 0.70710677
    %v120 = verf.f32.pop %v118
    %v121 = verf.f32.pop %v119
    %v122 = vadd.f32 %v120, 1.0
    %v123 = vadd.f32 %v121, 1.0
    %v124 = vmul.f32 %v116, %v122
    %v125 = vmul.f32 %v117, %v123
    %v126 = vld [vmem:[%s3] sm:$0xff]
    %v127 = vld [vmem:[%s3 + $0x8] sm:$0xff]
    %v128 = vld [vmem:[%s3 + $0x10] sm:$0xff]
    %v129 = vld [vmem:[%s3 + $0x18] sm:$0xff]
    %v130 = vld [vmem:[%s3 + $0x20] sm:$0xff]
    %v131 = vld [vmem:[%s3 + $0x28] sm:$0xff]
    %v132 = vld [vmem:[%s3 + $0x30] sm:$0xff]
    %v133 = vld [vmem:[%s3 + $0x38] sm:$0xff]
    %v134 = vld [vmem:[%s4] sm:$0x1]
    %v136 = vlaneseq
    %v137 = vshrl.u32 %v136, 7
    %v138 = vsub.s32 0, %v137
    %v139 = vrot.slane %v134, %v138
    %vm141 = vcmask 523264
    %v143 = vsel %vm141, %v124, 0
    %v146 = vsel %vm141, %v125, 0
    %148 = vmatprep.subr.mxu0 0.0
    %149 = vmatpush1.msra.mxu0 %v126
    %150 = vmatprep.subr.mxu0 0.0
    %151 = vmatpush1.msra.mxu0 %v127
    %152 = vmatprep.subr.mxu0 0.0
    %153 = vmatpush1.msra.mxu0 %v128
    %154 = vmatprep.subr.mxu0 0.0
    %155 = vmatpush1.msra.mxu0 %v129
    %156 = vmatprep.subr.mxu0 0.0
    %157 = vmatpush1.msra.mxu0 %v130
    %158 = vmatprep.subr.mxu0 0.0
    %159 = vmatpush1.msra.mxu0 %v131
    %160 = vmatprep.subr.mxu0 0.0
    %161 = vmatpush1.msra.mxu0 %v132
    %162 = vmatprep.subr.mxu0 0.0
    %163 = vmatpush1.msra.mxu0 %v133
    %164 = vmatprep.subr.mxu0 0.0
    %165 = vmatpush1.msra.mxu0 0.0
    %166 = vmatprep.subr.mxu0 0.0
    %167 = vmatpush1.msra.mxu0 0.0
    %168 = vmatprep.subr.mxu0 0.0
    %169 = vmatpush1.msra.mxu0 0.0
    %170 = vmatprep.subr.mxu0 0.0
    %171 = vmatpush1.msra.mxu0 0.0
    %172 = vmatprep.subr.mxu0 0.0
    %173 = vmatpush1.msra.mxu0 0.0
    %174 = vmatprep.subr.mxu0 0.0
    %175 = vmatpush1.msra.mxu0 0.0
    %176 = vmatprep.subr.mxu0 0.0
    %177 = vmatpush1.msra.mxu0 0.0
    %178 = vmatprep.subr.mxu0 0.0
    %179 = vmatpush1.msra.mxu0 0.0
    %180 = vmatprep.subr.mxu0 0.0
    %181 = vmatpush1.msra.mxu0 0.0
    %182 = vmatprep.subr.mxu0 0.0
    %183 = vmatpush1.msra.mxu0 0.0
    %184 = vmatprep.subr.mxu0 0.0
    %185 = vmatpush1.msra.mxu0 0.0
    %186 = vmatprep.subr.mxu0 0.0
    %187 = vmatpush1.msra.mxu0 0.0
    %188 = vmatprep.subr.mxu0 0.0
    %189 = vmatpush1.msra.mxu0 0.0
    %190 = vmatprep.subr.mxu0 0.0
    %191 = vmatpush1.msra.mxu0 0.0
    %192 = vmatprep.subr.mxu0 0.0
    %193 = vmatpush1.msra.mxu0 0.0
    %194 = vmatprep.subr.mxu0 0.0
    %195 = vmatpush1.msra.mxu0 0.0
    %196 = vmatprep.subr.mxu0 0.0
    %197 = vmatpush1.msra.mxu0 0.0
    %198 = vmatprep.subr.mxu0 0.0
    %199 = vmatpush1.msra.mxu0 0.0
    %200 = vmatprep.subr.mxu0 0.0
    %201 = vmatpush1.msra.mxu0 0.0
    %202 = vmatprep.subr.mxu0 0.0
    %203 = vmatpush1.msra.mxu0 0.0
    %204 = vmatprep.subr.mxu0 0.0
    %205 = vmatpush1.msra.mxu0 0.0
    %206 = vmatprep.subr.mxu0 0.0
    %207 = vmatpush1.msra.mxu0 0.0
    %208 = vmatprep.subr.mxu0 0.0
    %209 = vmatpush1.msra.mxu0 0.0
    %210 = vmatprep.subr.mxu0 0.0
    %211 = vmatpush1.msra.mxu0 0.0
    %212 = vmatprep.mubr.f32.mxu0 0.0
    %213 = vmatmul.mubr.f32.gmra.mrb[0].mxu0 %v143
    %v214 = vpop.f32.mrb[0].mxu0
    %v215 = vadd.f32 %v139, %v214
    %v216 = vpop.f32.mrb[0].mxu0
    %217 = vmatprep.mubr.f32.mxu0 0.0
    %218 = vmatmul.mubr.f32.gmra.mrb[0].mxu0 %v146
    %v219 = vpop.f32.mrb[0].mxu0
    %v220 = vadd.f32 %v139, %v219
    %v221 = vpop.f32.mrb[0].mxu0
    %222 = vdwg.mxu0
    %223 = vst.msk [vmem:[#allocation3] sm:$0xff] %vm34, %v215
    %224 = vst.msk [vmem:[#allocation3 + $0x8] sm:$0xff] %vm34, %v220
    // Predicated region
    $region22: #{mlp_forward.1} parent=1 // pred_check
      _
    $region23: #{mlp_forward.1} parent=1 // pred_check_branch
      %226 = sbr.rel (0) target = $region25
    $region24: #{mlp_forward.1} parent=1 // pred_region
      %s228 = ssub.s32 256, 256
      %229 = vsyncadd [#allocation4], %s228
      %s230 = sshll.u32 [#allocation3], 4
      %s231 = int_to_ptr.vmem [resolvable:$true] %s230
      %236 = dma.vmem_to_hbm [thread:$0]  %s231, 256, %s5, [#allocation4], 128, 128, 8
    $region25: #{mlp_forward.1} parent=1 // pred_fallthru
      _
    // Predicated region
    $region26: #{mlp_forward.1} parent=1 // pred_check
      _
    $region27: #{mlp_forward.1} parent=1 // pred_check_branch
      %238 = sbr.rel (0) target = $region29
    $region28: #{mlp_forward.1} parent=1 // pred_region
      %239 = dma.done [#allocation4], 256
    $region29: #{mlp_forward.1} parent=1 // pred_fallthru
      _
    %240 = vsyncpa [#allocation4], 1

</llo_original>
